<compile_context>
chip_gen: v7x
topology: tpu7x:2x2x1
jax: 0.10.0
libtpu: 0.0.40
codegen_flags: <defaults>
</compile_context>

<pallas_src>
import functools

import jax
import jax.numpy as jnp
from jax.experimental import pallas as pl
from jax.experimental.pallas import tpu as pltpu

MAX_TILE_E = 8192  # edges per grid step (multiple of 128); capped to padded E


def _guidance_kernel(diff_ref, type_ref, out_ref, acc_ref,
                     *, dmin, dmax, eps1, eps2):
    # Zero the vector accumulator on the first grid step.
    @pl.when(pl.program_id(0) == 0)
    def _():
        acc_ref[...] = jnp.zeros_like(acc_ref)

    diff = diff_ref[...].astype(jnp.float32)               # (D, TILE_E)
    d2 = jnp.sum(diff * diff, axis=0, keepdims=True)       # (1, TILE_E)
    d = jnp.sqrt(d2)                                       # (1, TILE_E)
    right = jnp.maximum(dmin - d, 0.0)
    left = jnp.maximum(d - dmax, 0.0)
    drift = eps1 * left + eps2 * right                     # (1, TILE_E)
    mask = type_ref[...] != 0                              # padded edges: type 0
    acc_ref[...] = acc_ref[...] + jnp.where(mask, drift, 0.0)

    # Single cross-lane reduce + scalar store, only on the last grid step.
    @pl.when(pl.program_id(0) == pl.num_programs(0) - 1)
    def _():
        out_ref[...] = jnp.sum(acc_ref[...], axis=(0, 1), keepdims=True)


def inter_bond_distance_guidance(x1, x2, e12_type, e12_index,
                                 distance_min_max=(2.0, 8.0),
                                 epsilon1=0.1, epsilon2=0.1):
    dmin, dmax = distance_min_max
    E = int(e12_index.shape[1])
    if E == 0:
        return jnp.float32(0.0)
    D = x1.shape[1]

    # Glue: the data-dependent row gather stays in JAX, but gather + subtract
    # fuse into one XLA pass producing a single staged (D, E) array in the
    # input dtype (upcast happens inside the kernel).
    # TODO(synk): fold the row gather itself into the kernel (indices via
    # scalar prefetch) once a clean VMEM row-gather path is available.
    diff = (jnp.take(x1, e12_index[0], axis=0)
            - jnp.take(x2, e12_index[1], axis=0)).T        # (D, E)
    types = e12_type.astype(jnp.int32)[None, :]            # (1, E)

    e_pad128 = ((E + 127) // 128) * 128
    tile_e = min(MAX_TILE_E, e_pad128)
    e_pad = ((E + tile_e - 1) // tile_e) * tile_e
    pad = e_pad - E
    diff = jnp.pad(diff, ((0, 0), (0, pad)))
    types = jnp.pad(types, ((0, 0), (0, pad)))             # pad type=0 -> masked

    grid = (e_pad // tile_e,)

    kernel = functools.partial(
        _guidance_kernel,
        dmin=float(dmin), dmax=float(dmax),
        eps1=float(epsilon1), eps2=float(epsilon2),
    )

    bytes_accessed = (e_pad * D * diff.dtype.itemsize       # diff read
                      + e_pad * 4                           # types read
                      + 4)                                  # scalar out
    cost = pl.CostEstimate(flops=12 * e_pad,
                           transcendentals=e_pad,           # sqrt per edge
                           bytes_accessed=bytes_accessed)

    out = pl.pallas_call(
        kernel,
        out_shape=jax.ShapeDtypeStruct((1, 1), jnp.float32),
        grid_spec=pltpu.PrefetchScalarGridSpec(
            num_scalar_prefetch=0,
            grid=grid,
            in_specs=[
                pl.BlockSpec((D, tile_e), lambda i: (0, i)),
                pl.BlockSpec((1, tile_e), lambda i: (0, i)),
            ],
            out_specs=pl.BlockSpec((1, 1), lambda i: (0, 0)),
            scratch_shapes=[pltpu.VMEM((1, tile_e), jnp.float32)],
        ),
        compiler_params=pltpu.CompilerParams(
            dimension_semantics=("arbitrary",)),  # reduction axis (accumulator)
        cost_estimate=cost,
    )(diff, types)
    return out[0, 0]


if __name__ == "__main__":
    key = jax.random.PRNGKey(0)
    k1, k2, k3, k4, k5 = jax.random.split(key, 5)

    N1, N2, D, E = 16, 16, 3, 20
    x1 = jax.random.normal(k1, (N1, D), jnp.float32) * 5.0
    x2 = jax.random.normal(k2, (N2, D), jnp.float32) * 5.0
    e12_index = jnp.stack(
        [jax.random.randint(k3, (E,), 0, N1),
         jax.random.randint(k4, (E,), 0, N2)], axis=0)          # (2, E) int32
    e12_type = jax.random.randint(k5, (E,), 0, 3)               # (E,) int32

    out = inter_bond_distance_guidance(x1, x2, e12_type, e12_index)
    out = jax.block_until_ready(out)

    # Pure-JAX reference (mirrors the PyTorch forward).
    d = jnp.linalg.norm(x1[e12_index[0]] - x2[e12_index[1]], axis=1)
    right = jnp.maximum(2.0 - d, 0.0)
    left = jnp.maximum(d - 8.0, 0.0)
    drift = 0.1 * left + 0.1 * right
    drift = jnp.where(e12_type == 0, 0.0, drift)
    ref = drift.sum()

    assert jnp.allclose(out, ref, rtol=1e-5, atol=1e-5), (out, ref)
    print("KERNEL_OK")
</pallas_src>

<mosaic_0001>
module attributes {stable_mosaic.version = 11 : i64} {
  func.func @_guidance_kernel(%arg0: i32, %arg1: memref<3x128xf32, #tpu.memory_space<vmem>>, %arg2: memref<1x128xi32, #tpu.memory_space<vmem>>, %arg3: memref<1x1xf32, #tpu.memory_space<vmem>>, %arg4: memref<1x128xf32, #tpu.memory_space<vmem>>) attributes {dimension_semantics = [#tpu.dimension_semantics<arbitrary>], iteration_bounds = array<i64: 1>, scalar_prefetch = 0 : i64, scratch_operands = 1 : i64, tpu.core_type = #tpu.core_type<tc>, window_params = [{transform_indices = @transform_0, window_bounds = array<i64: 3, 128>}, {transform_indices = @transform_1, window_bounds = array<i64: 1, 128>}, {pipeline_mode = #tpu.pipeline_mode<synchronous>, transform_indices = @transform_2, window_bounds = array<i64: 1, 1>}]} {
    %c0_i32 = arith.constant 0 : i32
    %0 = arith.cmpi eq, %arg0, %c0_i32 : i32
    %1 = arith.extui %0 : i1 to i32
    %c0_i32_0 = arith.constant 0 : i32
    %2 = arith.cmpi ne, %1, %c0_i32_0 : i32
    scf.if %2 {
      %cst_18 = arith.constant 0.000000e+00 : f32
      %32 = vector.broadcast %cst_18 : f32 to vector<1x128xf32>
      %c0_19 = arith.constant 0 : index
      %c0_20 = arith.constant 0 : index
      %33 = vector.load %arg4[%c0_19, %c0_20] : memref<1x128xf32, #tpu.memory_space<vmem>>, vector<1x128xf32>
      tpu.vector_store %arg4[%c0_19, %c0_20], %32 {strides = array<i32>} : memref<1x128xf32, #tpu.memory_space<vmem>>, vector<1x128xf32>,
    } else {
    }
    %c0 = arith.constant 0 : index
    %c0_1 = arith.constant 0 : index
    %3 = vector.load %arg1[%c0, %c0_1] : memref<3x128xf32, #tpu.memory_space<vmem>>, vector<3x128xf32>
    %4 = arith.mulf %3, %3 : vector<3x128xf32>
    %cst = arith.constant dense<0.000000e+00> : vector<128xf32>
    %5 = vector.multi_reduction <add>, %4, %cst [0] : vector<3x128xf32> to vector<128xf32>
    %6 = vector.shape_cast %5 : vector<128xf32> to vector<1x128xf32>
    %7 = math.sqrt %6 : vector<1x128xf32>
    %cst_2 = arith.constant 2.000000e+00 : f32
    %8 = vector.broadcast %cst_2 : f32 to vector<1x128xf32>
    %9 = arith.subf %8, %7 : vector<1x128xf32>
    %cst_3 = arith.constant 0.000000e+00 : f32
    %10 = vector.broadcast %cst_3 : f32 to vector<1x128xf32>
    %11 = arith.maximumf %9, %10 : vector<1x128xf32>
    %cst_4 = arith.constant 8.000000e+00 : f32
    %12 = vector.broadcast %cst_4 : f32 to vector<1x128xf32>
    %13 = arith.subf %7, %12 : vector<1x128xf32>
    %cst_5 = arith.constant 0.000000e+00 : f32
    %14 = vector.broadcast %cst_5 : f32 to vector<1x128xf32>
    %15 = arith.maximumf %13, %14 : vector<1x128xf32>
    %cst_6 = arith.constant 1.000000e-01 : f32
    %16 = vector.broadcast %cst_6 : f32 to vector<1x128xf32>
    %17 = arith.mulf %16, %15 : vector<1x128xf32>
    %cst_7 = arith.constant 1.000000e-01 : f32
    %18 = vector.broadcast %cst_7 : f32 to vector<1x128xf32>
    %19 = arith.mulf %18, %11 : vector<1x128xf32>
    %20 = arith.addf %17, %19 : vector<1x128xf32>
    %c0_8 = arith.constant 0 : index
    %c0_9 = arith.constant 0 : index
    %21 = vector.load %arg2[%c0_8, %c0_9] : memref<1x128xi32, #tpu.memory_space<vmem>>, vector<1x128xi32>
    %c0_i32_10 = arith.constant 0 : i32
    %22 = vector.broadcast %c0_i32_10 : i32 to vector<1x128xi32>
    %23 = arith.cmpi ne, %21, %22 : vector<1x128xi32>
    %c0_11 = arith.constant 0 : index
    %c0_12 = arith.constant 0 : index
    %24 = vector.load %arg4[%c0_11, %c0_12] : memref<1x128xf32, #tpu.memory_space<vmem>>, vector<1x128xf32>
    %cst_13 = arith.constant 0.000000e+00 : f32
    %25 = vector.broadcast %cst_13 : f32 to vector<1x128xf32>
    %26 = arith.select %23, %20, %25 : vector<1x128xi1>, vector<1x128xf32>
    %27 = arith.addf %24, %26 : vector<1x128xf32>
    %c0_14 = arith.constant 0 : index
    %c0_15 = arith.constant 0 : index
    %28 = vector.load %arg4[%c0_14, %c0_15] : memref<1x128xf32, #tpu.memory_space<vmem>>, vector<1x128xf32>
    tpu.vector_store %arg4[%c0_14, %c0_15], %27 {strides = array<i32>} : memref<1x128xf32, #tpu.memory_space<vmem>>, vector<1x128xf32>,
    %c0_i32_16 = arith.constant 0 : i32
    %29 = arith.cmpi eq, %arg0, %c0_i32_16 : i32
    %30 = arith.extui %29 : i1 to i32
    %c0_i32_17 = arith.constant 0 : i32
    %31 = arith.cmpi ne, %30, %c0_i32_17 : i32
    scf.if %31 {
      %c0_18 = arith.constant 0 : index
      %c0_19 = arith.constant 0 : index
      %32 = vector.load %arg4[%c0_18, %c0_19] : memref<1x128xf32, #tpu.memory_space<vmem>>, vector<1x128xf32>
      %33 = vector.shape_cast %32 : vector<1x128xf32> to vector<1x1x128xf32>
      %cst_20 = arith.constant dense<0.000000e+00> : vector<1xf32>
      %34 = vector.multi_reduction <add>, %33, %cst_20 [1, 2] : vector<1x1x128xf32> to vector<1xf32>
      %35 = vector.shape_cast %34 : vector<1xf32> to vector<1x1x1xf32>
      %36 = vector.extract %35[0, 0, 0] : f32 from vector<1x1x1xf32>
      %37 = vector.broadcast %36 : f32 to vector<1x1xf32>
      %c0_21 = arith.constant 0 : index
      %c0_22 = arith.constant 0 : index
      %38 = vector.load %arg3[%c0_21, %c0_22] : memref<1x1xf32, #tpu.memory_space<vmem>>, vector<1x1xf32>
      tpu.vector_store %arg3[%c0_21, %c0_22], %37 {strides = array<i32>} : memref<1x1xf32, #tpu.memory_space<vmem>>, vector<1x1xf32>,
    } else {
    }
    return
  }
  func.func @transform_0(%arg0: i32) -> (i32, i32) {
    %c0_i32 = arith.constant 0 : i32
    %c0_i32_0 = arith.constant 0 : i32
    return %c0_i32, %arg0 : i32, i32
  }
  func.func @transform_1(%arg0: i32) -> (i32, i32) {
    %c0_i32 = arith.constant 0 : i32
    %c0_i32_0 = arith.constant 0 : i32
    return %c0_i32, %arg0 : i32, i32
  }
  func.func @transform_2(%arg0: i32) -> (i32, i32) {
    %c0_i32 = arith.constant 0 : i32
    %c0_i32_0 = arith.constant 0 : i32
    %c0_i32_1 = arith.constant 0 : i32
    return %c0_i32, %c0_i32_0 : i32, i32
  }
}

</mosaic_0001>

<llo_original>
// kernel: tpu_custom_call.1
$region0: #{tpu_custom_call.1}
  #allocation0 [shape = 'u32[]', space=smem, size = 0x4, offset = 0x4, fixed_abs, tag = 'smem constant byte address 0x4 - core index']
  #allocation1 [shape = 'u32[144,128]{1,0:T(1,128)}', space=vmem, size = 0x12000, scoped, tag = 'internal scratch']
  #allocation2 [shape = 'f32[1,128]{1,0:T(1,128)}', space=vmem, size = 0x200, scoped, tag = 'scratch operand']
  %s0 = inlined_call_operand.hbm [shape: f32[3,128], index: 0, kind: input, shape index: {}]
  %s1 = inlined_call_operand.vmem [shape: s32[1,128], index: 1, kind: input, shape index: {}]
  %s2 = inlined_call_operand.hbm [shape: f32[1,1], index: 2, kind: output, shape index: {}]
  %s3 = sld [smem:[#allocation0]]
  $region30: #{tpu_custom_call.1} parent=0
    _
  %s5 = ssub.s32 1, %s3
  %s6 = scalar_select 0, %s5, %s3
  $region1: #{tpu_custom_call.1} parent=0
    #allocation3 [shape = 'u8[2048]{0}', space=vmem, size = 0x800, scoped, tag = 'input window, operand 0, single buffered']
    #allocation4 [shape = 's32[1]{0}', space=sflag, size = 0x4, scoped, tag = 'scoped memory for tpu_custom_call.1']
    #allocation5 [shape = 's32[1]{0}', space=sflag, size = 0x4, scoped, tag = 'scoped memory for tpu_custom_call.1']
    #allocation6 [shape = 'u8[512]{0}', space=vmem, size = 0x400, scoped, tag = 'output window, operand 0, single buffered']
    %7 = vsyncpa [#allocation4], 0
    %8 = vsyncpa [#allocation5], 0
    // Predicated region
    $region2: #{tpu_custom_call.1} parent=1 // pred_check
      _
    $region3: #{tpu_custom_call.1} parent=1 // pred_check_branch
      %10 = sbr.rel (0) target = $region5
    $region4: #{tpu_custom_call.1} parent=1 // pred_region
      %s12 = ssub.s32 64, 64
      %13 = vsyncadd [#allocation4], %s12
      %s15 = sshll.u32 [#allocation3], 4
      %s16 = int_to_ptr.vmem [resolvable:$true] %s15
      %18 = dma.hbm_to_vmem [thread:$0]  %s0, 64, %s16, [#allocation4]
    $region5: #{tpu_custom_call.1} parent=1 // pred_fallthru
      _
    // Predicated region
    $region6: #{tpu_custom_call.1} parent=1 // pred_check
      _
    $region7: #{tpu_custom_call.1} parent=1 // pred_check_branch
      %20 = sbr.rel (0) target = $region9
    $region8: #{tpu_custom_call.1} parent=1 // pred_region
      _
    $region9: #{tpu_custom_call.1} parent=1 // pred_fallthru
      _
    // Predicated region
    $region10: #{tpu_custom_call.1} parent=1 // pred_check
      _
    $region11: #{tpu_custom_call.1} parent=1 // pred_check_branch
      %22 = sbr.rel (0) target = $region13
    $region12: #{tpu_custom_call.1} parent=1 // pred_region
      %23 = dma.done [#allocation4], 64
    $region13: #{tpu_custom_call.1} parent=1 // pred_fallthru
      _
    %p24 = scmp.eq.s32.totalorder 0, 0
    // Predicated region
    $region14: #{tpu_custom_call.1} parent=1 // pred_check
      %p25 = pneg %p24
    $region15: #{tpu_custom_call.1} parent=1 // pred_check_branch
      %27 = sbr.rel (%p25) target = $region17
    $region16: #{tpu_custom_call.1} parent=1 // pred_region
      %28 = vst [vmem:[#allocation2] sm:$0x1] 0.0
    $region17: #{tpu_custom_call.1} parent=1 // pred_fallthru
      _
    %v29 = vld [vmem:[#allocation3] sm:$0x7]
    %v30 = vmul.f32 %v29, %v29
    %vm31 = vcmask 1042432
    %v32 = vsel %vm31, %v30, 0.0
    %v33 = vrot.slane %v32, 4
    %v34 = vadd.f32 %v32, %v33
    %v35 = vrot.slane %v34, 2
    %v36 = vadd.f32 %v34, %v35
    %v37 = vrot.slane %v36, 1
    %v38 = vadd.f32 %v36, %v37
    %v39 = vrsqrt.pop %v38
    %v40 = vmul.f32 %v38, %v39
    %vm41 = vcmp.eq.f32.partialorder %v38, inf
    %v42 = vsel %vm41, %v38, %v40
    %vm43 = vcmp.eq.f32.partialorder %v38, 0.0
    %v44 = vand.u32 %v38, 2147483648
    %v45 = vsel %vm43, %v44, %v42
    %v46 = vsub.f32 2.0, %v45
    %v47 = vmax.f32 %v46, 0.0
    %v48 = vsub.f32 %v45, 8.0
    %v49 = vmax.f32 %v48, 0.0
    %v50 = vmul.f32 %v49, 0.1
    %v51 = vmul.f32 %v47, 0.1
    %v52 = vadd.f32 %v50, %v51
    %v53 = vld [vmem:[%s1] sm:$0x1]
    %vm54 = vcmp.ne.s32.totalorder %v53, 0
    %v55 = vld [vmem:[#allocation2] sm:$0x1]
    %v56 = vsel %vm54, %v52, 0.0
    %v57 = vadd.f32 %v55, %v56
    %58 = vst [vmem:[#allocation2] sm:$0x1] %v57
    // Predicated region
    $region18: #{tpu_custom_call.1} parent=1 // pred_check
      %p59 = pneg %p24
    $region19: #{tpu_custom_call.1} parent=1 // pred_check_branch
      %61 = sbr.rel (%p59) target = $region21
    $region20: #{tpu_custom_call.1} parent=1 // pred_region
      %v62 = vld [vmem:[#allocation2] sm:$0x1]
      %vm63 = vcmask 1040384
      %v64 = vsel %vm63, %v62, 0.0
      %65 = vadd.xlane.f32.xlu0 %v64
      %v66 = vpop.xlane.xlu0 %65
      %v67 = vrot.slane %v66, 4
      %v68 = vadd.f32 %v66, %v67
      %v69 = vrot.slane %v68, 2
      %v70 = vadd.f32 %v68, %v69
      %v71 = vrot.slane %v70, 1
      %v72 = vadd.f32 %v70, %v71
      %s73 = vtos %v72
      %v74 = vstv %s73
      %vm75 = vcmask 0
      %76 = vst.msk [vmem:[#allocation6] sm:$0x1] %vm75, %v74
    $region21: #{tpu_custom_call.1} parent=1 // pred_fallthru
      _
    // Predicated region
    $region22: #{tpu_custom_call.1} parent=1 // pred_check
      _
    $region23: #{tpu_custom_call.1} parent=1 // pred_check_branch
      %78 = sbr.rel (0) target = $region25
    $region24: #{tpu_custom_call.1} parent=1 // pred_region
      %s80 = ssub.s32 16, 16
      %81 = vsyncadd [#allocation5], %s80
      %s83 = sshll.u32 [#allocation6], 4
      %s84 = int_to_ptr.vmem [resolvable:$true] %s83
      %86 = dma.vmem_to_hbm [thread:$0]  %s84, 16, %s2, [#allocation5]
    $region25: #{tpu_custom_call.1} parent=1 // pred_fallthru
      _
    // Predicated region
    $region26: #{tpu_custom_call.1} parent=1 // pred_check
      _
    $region27: #{tpu_custom_call.1} parent=1 // pred_check_branch
      %88 = sbr.rel (0) target = $region29
    $region28: #{tpu_custom_call.1} parent=1 // pred_region
      %89 = dma.done [#allocation5], 16
    $region29: #{tpu_custom_call.1} parent=1 // pred_fallthru
      _
    %90 = vsyncpa [#allocation4], 1
    %91 = vsyncpa [#allocation5], 1

</llo_original>
